<compile_context>
chip_gen: v7x
topology: tpu7x:2x2x1
jax: 0.10.0
libtpu: 0.0.40
codegen_flags: <defaults>
</compile_context>

<pallas_src>
import functools

import jax
import jax.numpy as jnp
from jax.experimental import pallas as pl
from jax.experimental.pallas import tpu as pltpu


def _preemphasis_kernel(x_ref, prev0_ref, o_ref, *, coef):
    x = x_ref[...]                       # (tb, tt) tile in VMEM

    # prev[:, t] = x[:, t-1]; column 0 wraps to x[:, tt-1] and is fixed below.
    prev = pltpu.roll(x, shift=1, axis=1)

    # Unconditional full-tile store (lane-dense, unmasked vst).
    o_ref[...] = x - coef * prev

    # Narrow corrective store for column 0: its true predecessor is the
    # boundary value (previous tile's last sample, or x[:, 1] on tile 0).
    col0 = prev0_ref[0]                  # (tb, 1)
    o_ref[:, 0:1] = x[:, 0:1] - coef * col0


def _ceil_to(n, m):
    return pl.cdiv(n, m) * m


def _largest_divisor_tile(dim, target, align):
    """dim is a multiple of `align`; largest multiple of `align` dividing `dim`
    that is <= target (falls back to `align`)."""
    if dim <= target:
        return dim
    t = (target // align) * align
    while t > align:
        if dim % t == 0:
            return t
        t -= align
    return align


def pre_emphasis(x, coef=0.97, *, tb=None, tt=None):
    """x: (B, T) audio batch.  Returns x[:, t] - coef * x[:, t-1] (reflect pad)."""
    B, T = x.shape
    assert T >= 2, "reflect padding needs at least 2 samples"

    # Sublane-aligned B tile (multiple of 8) dividing the 8-padded batch.
    B8 = _ceil_to(B, 8)
    if tb is None:
        tb = _largest_divisor_tile(B8, 256, 8)
    assert tb % 8 == 0 and B8 % tb == 0
    B_pad = B8

    # Lane-dense T tile (multiple of 128).  If the batch tile came out small,
    # grow the T tile so blocks stay a reasonable size; footprint stays <= ~8 MiB
    # double-buffered (in + out) at f32, safe on v5e/v6e/v7x default VMEM limits.
    if tt is None:
        tt_target = 2048 if tb >= 64 else 8192
        tt = min(tt_target, _ceil_to(T, 128))
    assert tt % 128 == 0
    T_pad = _ceil_to(T, tt)
    nT = T_pad // tt

    xp = x
    if (B_pad, T_pad) != (B, T):
        xp = jnp.pad(x, ((0, B_pad - B), (0, T_pad - T)))

    # Boundary column: predecessor of each T tile's first element.
    #   tile 0   -> reflect value x[:, 1]
    #   tile j>0 -> x[:, j*tt - 1]
    idx = jnp.arange(nT) * tt - 1
    idx = idx.at[0].set(1)
    prev0 = jnp.transpose(xp[:, idx])[:, :, None]        # (nT, B_pad, 1)

    kernel = functools.partial(_preemphasis_kernel, coef=float(coef))
    y = pl.pallas_call(
        kernel,
        out_shape=jax.ShapeDtypeStruct((B_pad, T_pad), x.dtype),
        grid_spec=pltpu.PrefetchScalarGridSpec(
            num_scalar_prefetch=0,
            grid=(B_pad // tb, nT),
            in_specs=[
                pl.BlockSpec((tb, tt), lambda i, j: (i, j)),
                pl.BlockSpec((1, tb, 1), lambda i, j: (j, i, 0)),
            ],
            out_specs=pl.BlockSpec((tb, tt), lambda i, j: (i, j)),
        ),
        compiler_params=pltpu.CompilerParams(
            # No cross-tile carry -> both axes are independent; lets v7x shard
            # the T axis across both TensorCores even when B_pad // tb == 1.
            dimension_semantics=("parallel", "parallel")),
    )(xp, prev0)

    if (B_pad, T_pad) != (B, T):
        y = y[:B, :T]
    return y


def _reference(x, coef):
    # Pure-JAX mirror of the PyTorch forward (reflect pad + [-coef, 1] conv).
    xp = jnp.pad(x, ((0, 0), (1, 0)), mode="reflect")    # (B, T+1)
    return xp[:, 1:] - coef * xp[:, :-1]


if __name__ == "__main__":
    coef = 0.97
    # PyTorch buffer equivalent: flipped_filter = [[[-coef, 1.0]]] (baked as float).
    key = jax.random.PRNGKey(0)
    B, T = 4, 1024
    x = jax.random.normal(key, (B, T), dtype=jnp.float32)

    y_ref = _reference(x, coef)

    # Default tiling (single T tile at this small T).
    y0 = jax.block_until_ready(pre_emphasis(x, coef))
    # Forced multi-tile along T to exercise the boundary-column path.
    y1 = jax.block_until_ready(pre_emphasis(x, coef, tt=256))

    assert y0.shape == (B, T) and y1.shape == (B, T)
    assert jnp.allclose(y0, y_ref, atol=1e-6, rtol=1e-6), "default tiling mismatch"
    assert jnp.allclose(y1, y_ref, atol=1e-6, rtol=1e-6), "tiled-T boundary mismatch"

    # Ragged length (T not a multiple of 128) exercises the pad/trim path.
    x2 = jax.random.normal(jax.random.PRNGKey(0), (3, 1000), dtype=jnp.float32)
    y2 = jax.block_until_ready(pre_emphasis(x2, coef, tt=256))
    assert y2.shape == (3, 1000)
    assert jnp.allclose(y2, _reference(x2, coef), atol=1e-6, rtol=1e-6), \
        "ragged-shape pad/trim mismatch"

    print("KERNEL_OK")
</pallas_src>

<mosaic_0001>
module attributes {stable_mosaic.version = 11 : i64} {
  func.func @_preemphasis_kernel(%arg0: i32, %arg1: i32, %arg2: memref<8x1024xf32, #tpu.memory_space<vmem>>, %arg3: memref<1x8x1xf32, #tpu.memory_space<vmem>>, %arg4: memref<8x1024xf32, #tpu.memory_space<vmem>>) attributes {dimension_semantics = [#tpu.dimension_semantics<parallel>, #tpu.dimension_semantics<parallel>], iteration_bounds = array<i64: 1, 1>, scalar_prefetch = 0 : i64, scratch_operands = 0 : i64, tpu.core_type = #tpu.core_type<tc>, window_params = [{transform_indices = @transform_0, window_bounds = array<i64: 8, 1024>}, {transform_indices = @transform_1, window_bounds = array<i64: 1, 8, 1>}, {transform_indices = @transform_2, window_bounds = array<i64: 8, 1024>}]} {
    %c0 = arith.constant 0 : index
    %c0_0 = arith.constant 0 : index
    %0 = vector.load %arg2[%c0, %c0_0] : memref<8x1024xf32, #tpu.memory_space<vmem>>, vector<8x1024xf32>
    %c1_i32 = arith.constant 1 : i32
    %1 = tpu.dynamic_rotate %0 by %c1_i32 dim 1 : vector<8x1024xf32>, i32 -> vector<8x1024xf32>
    %cst = arith.constant 9.700000e-01 : f32
    %2 = vector.broadcast %cst : f32 to vector<8x1024xf32>
    %3 = arith.mulf %2, %1 : vector<8x1024xf32>
    %4 = arith.subf %0, %3 : vector<8x1024xf32>
    %c0_1 = arith.constant 0 : index
    %c0_2 = arith.constant 0 : index
    %5 = vector.load %arg4[%c0_1, %c0_2] : memref<8x1024xf32, #tpu.memory_space<vmem>>, vector<8x1024xf32>
    tpu.vector_store %arg4[%c0_1, %c0_2], %4 {strides = array<i32>} : memref<8x1024xf32, #tpu.memory_space<vmem>>, vector<8x1024xf32>,
    %c0_3 = arith.constant 0 : index
    %c0_4 = arith.constant 0 : index
    %c0_5 = arith.constant 0 : index
    %6 = vector.load %arg3[%c0_3, %c0_4, %c0_5] : memref<1x8x1xf32, #tpu.memory_space<vmem>>, vector<1x8x1xf32>
    %7 = vector.shape_cast %6 : vector<1x8x1xf32> to vector<8x1xf32>
    %8 = vector.extract_strided_slice %0 {offsets = [0, 0], sizes = [8, 1], strides = [1, 1]} : vector<8x1024xf32> to vector<8x1xf32>
    %cst_6 = arith.constant 9.700000e-01 : f32
    %9 = vector.broadcast %cst_6 : f32 to vector<8x1xf32>
    %10 = arith.mulf %9, %7 : vector<8x1xf32>
    %11 = arith.subf %8, %10 : vector<8x1xf32>
    %c0_7 = arith.constant 0 : index
    %c0_8 = arith.constant 0 : index
    %12 = vector.load %arg4[%c0_7, %c0_8] : memref<8x1024xf32, #tpu.memory_space<vmem>>, vector<8x1xf32>
    tpu.vector_store %arg4[%c0_7, %c0_8], %11 {strides = array<i32>} : memref<8x1024xf32, #tpu.memory_space<vmem>>, vector<8x1xf32>,
    return
  }
  func.func @transform_0(%arg0: i32, %arg1: i32) -> (i32, i32) {
    %c0_i32 = arith.constant 0 : i32
    return %arg0, %arg1 : i32, i32
  }
  func.func @transform_1(%arg0: i32, %arg1: i32) -> (i32, i32, i32) {
    %c0_i32 = arith.constant 0 : i32
    %c0_i32_0 = arith.constant 0 : i32
    return %arg1, %arg0, %c0_i32 : i32, i32, i32
  }
  func.func @transform_2(%arg0: i32, %arg1: i32) -> (i32, i32) {
    %c0_i32 = arith.constant 0 : i32
    return %arg0, %arg1 : i32, i32
  }
}

</mosaic_0001>

<llo_original>
// kernel: tpu_custom_call.1
$region0: #{tpu_custom_call.1}
  #allocation0 [shape = 'u32[]', space=smem, size = 0x4, offset = 0x4, fixed_abs, tag = 'smem constant byte address 0x4 - core index']
  #allocation1 [shape = 'u32[144,128]{1,0:T(1,128)}', space=vmem, size = 0x12000, scoped, tag = 'internal scratch']
  %s0 = inlined_call_operand.hbm [shape: f32[8,1024], index: 0, kind: input, shape index: {}]
  %s1 = inlined_call_operand.vmem [shape: f32[1,8,1], index: 1, kind: input, shape index: {}]
  %s2 = inlined_call_operand.hbm [shape: f32[8,1024], index: 2, kind: output, shape index: {}]
  %s3 = sld [smem:[#allocation0]]
  $region22: #{tpu_custom_call.1} parent=0
    _
  %s5 = ssub.s32 1, %s3
  %s6 = scalar_select 0, %s5, %s3
  $region1: #{tpu_custom_call.1} parent=0
    #allocation2 [shape = 'u8[32768]{0}', space=vmem, size = 0x8000, scoped, tag = 'input window, operand 0, single buffered']
    #allocation3 [shape = 's32[1]{0}', space=sflag, size = 0x4, scoped, tag = 'scoped memory for tpu_custom_call.1']
    #allocation4 [shape = 's32[1]{0}', space=sflag, size = 0x4, scoped, tag = 'scoped memory for tpu_custom_call.1']
    #allocation5 [shape = 'u8[32768]{0}', space=vmem, size = 0x8000, scoped, tag = 'output window, operand 0, single buffered']
    %7 = vsyncpa [#allocation3], 0
    %8 = vsyncpa [#allocation4], 0
    // Predicated region
    $region2: #{tpu_custom_call.1} parent=1 // pred_check
      _
    $region3: #{tpu_custom_call.1} parent=1 // pred_check_branch
      %10 = sbr.rel (0) target = $region5
    $region4: #{tpu_custom_call.1} parent=1 // pred_region
      %s12 = ssub.s32 1024, 1024
      %13 = vsyncadd [#allocation3], %s12
      %s15 = sshll.u32 [#allocation2], 4
      %s16 = int_to_ptr.vmem [resolvable:$true] %s15
      %18 = dma.hbm_to_vmem [thread:$0]  %s0, 1024, %s16, [#allocation3]
    $region5: #{tpu_custom_call.1} parent=1 // pred_fallthru
      _
    // Predicated region
    $region6: #{tpu_custom_call.1} parent=1 // pred_check
      _
    $region7: #{tpu_custom_call.1} parent=1 // pred_check_branch
      %20 = sbr.rel (0) target = $region9
    $region8: #{tpu_custom_call.1} parent=1 // pred_region
      _
    $region9: #{tpu_custom_call.1} parent=1 // pred_fallthru
      _
    // Predicated region
    $region10: #{tpu_custom_call.1} parent=1 // pred_check
      _
    $region11: #{tpu_custom_call.1} parent=1 // pred_check_branch
      %22 = sbr.rel (0) target = $region13
    $region12: #{tpu_custom_call.1} parent=1 // pred_region
      %23 = dma.done [#allocation3], 1024
    $region13: #{tpu_custom_call.1} parent=1 // pred_fallthru
      _
    %v24 = vld [vmem:[#allocation2] sm:$0xff]
    %v25 = vld [vmem:[#allocation2 + $0x8] sm:$0xff]
    %v26 = vld [vmem:[#allocation2 + $0x10] sm:$0xff]
    %v27 = vld [vmem:[#allocation2 + $0x18] sm:$0xff]
    %v28 = vld [vmem:[#allocation2 + $0x20] sm:$0xff]
    %v29 = vld [vmem:[#allocation2 + $0x28] sm:$0xff]
    %v30 = vld [vmem:[#allocation2 + $0x30] sm:$0xff]
    %v31 = vld [vmem:[#allocation2 + $0x38] sm:$0xff]
    %32 = vrot.lane.b32.xlu0 %v24, 1
    %v33 = vpop.permute.xlu0 %32
    %34 = vrot.lane.b32.xlu0 %v25, 1
    %v35 = vpop.permute.xlu0 %34
    %36 = vrot.lane.b32.xlu0 %v26, 1
    %v37 = vpop.permute.xlu0 %36
    %38 = vrot.lane.b32.xlu0 %v27, 1
    %v39 = vpop.permute.xlu0 %38
    %40 = vrot.lane.b32.xlu0 %v28, 1
    %v41 = vpop.permute.xlu0 %40
    %42 = vrot.lane.b32.xlu0 %v29, 1
    %v43 = vpop.permute.xlu0 %42
    %44 = vrot.lane.b32.xlu0 %v30, 1
    %v45 = vpop.permute.xlu0 %44
    %46 = vrot.lane.b32.xlu0 %v31, 1
    %v47 = vpop.permute.xlu0 %46
    %v48 = vlaneseq
    %v49 = vand.u32 %v48, 127
    %vm50 = vcmp.lt.s32.totalorder %v49, 1
    %v51 = vsel %vm50, %v45, %v47
    %v52 = vsel %vm50, %v43, %v45
    %v53 = vsel %vm50, %v41, %v43
    %v54 = vsel %vm50, %v39, %v41
    %v55 = vsel %vm50, %v37, %v39
    %v56 = vsel %vm50, %v35, %v37
    %v57 = vsel %vm50, %v33, %v35
    %v58 = vsel %vm50, %v47, %v33
    %v59 = vmul.f32 %v58, 0.97
    %v60 = vmul.f32 %v57, 0.97
    %v61 = vmul.f32 %v56, 0.97
    %v62 = vmul.f32 %v55, 0.97
    %v63 = vmul.f32 %v54, 0.97
    %v64 = vmul.f32 %v53, 0.97
    %v65 = vmul.f32 %v52, 0.97
    %v66 = vmul.f32 %v51, 0.97
    %v67 = vsub.f32 %v24, %v59
    %v68 = vsub.f32 %v25, %v60
    %v69 = vsub.f32 %v26, %v61
    %v70 = vsub.f32 %v27, %v62
    %v71 = vsub.f32 %v28, %v63
    %v72 = vsub.f32 %v29, %v64
    %v73 = vsub.f32 %v30, %v65
    %v74 = vsub.f32 %v31, %v66
    %75 = vst [vmem:[#allocation5] sm:$0xff] %v67
    %76 = vst [vmem:[#allocation5 + $0x8] sm:$0xff] %v68
    %77 = vst [vmem:[#allocation5 + $0x10] sm:$0xff] %v69
    %78 = vst [vmem:[#allocation5 + $0x18] sm:$0xff] %v70
    %79 = vst [vmem:[#allocation5 + $0x20] sm:$0xff] %v71
    %80 = vst [vmem:[#allocation5 + $0x28] sm:$0xff] %v72
    %81 = vst [vmem:[#allocation5 + $0x30] sm:$0xff] %v73
    %82 = vst [vmem:[#allocation5 + $0x38] sm:$0xff] %v74
    %v83 = vld [vmem:[%s1] sm:$0xff]
    %v84 = vmul.f32 %v83, 0.97
    %v85 = vsub.f32 %v24, %v84
    %vm86 = vcmask 7168
    %87 = vst.msk [vmem:[#allocation5] sm:$0xff] %vm86, %v85
    // Predicated region
    $region14: #{tpu_custom_call.1} parent=1 // pred_check
      _
    $region15: #{tpu_custom_call.1} parent=1 // pred_check_branch
      %89 = sbr.rel (0) target = $region17
    $region16: #{tpu_custom_call.1} parent=1 // pred_region
      %s91 = ssub.s32 1024, 1024
      %92 = vsyncadd [#allocation4], %s91
      %s94 = sshll.u32 [#allocation5], 4
      %s95 = int_to_ptr.vmem [resolvable:$true] %s94
      %97 = dma.vmem_to_hbm [thread:$0]  %s95, 1024, %s2, [#allocation4]
    $region17: #{tpu_custom_call.1} parent=1 // pred_fallthru
      _
    // Predicated region
    $region18: #{tpu_custom_call.1} parent=1 // pred_check
      _
    $region19: #{tpu_custom_call.1} parent=1 // pred_check_branch
      %99 = sbr.rel (0) target = $region21
    $region20: #{tpu_custom_call.1} parent=1 // pred_region
      %100 = dma.done [#allocation4], 1024
    $region21: #{tpu_custom_call.1} parent=1 // pred_fallthru
      _
    %101 = vsyncpa [#allocation3], 1
    %102 = vsyncpa [#allocation4], 1

</llo_original>
